<compile_context>
chip_gen: v5e
topology: v5e:2x2
jax: 0.10.0
libtpu: 0.0.40
codegen_flags: <defaults>
</compile_context>

<pallas_src>
import math

import jax
import jax.numpy as jnp
from jax.experimental import pallas as pl
from jax.experimental.pallas import tpu as pltpu


def diffusion_loss_kernel(sa_ref, s1ma_ref,             # SMEM (B,) per-batch scalars
                          x0_ref, cond_ref, noise_ref,  # VMEM (B, C, HW) bf16
                          w_ref,                        # VMEM (C, 2C) bf16 fused 1x1-conv weight
                          bias_ref,                     # VMEM (B, C, 1) f32 time bias
                          loss_ref):                    # VMEM (1, 1) f32 sum of squared error
    B = x0_ref.shape[0]
    w = w_ref[...]                                      # (C, 2C) bf16

    sq_acc = None
    for b in range(B):                                  # B is small and static: unrolled
        x0 = x0_ref[b].astype(jnp.float32)              # (C, HW) f32
        cond = cond_ref[b].astype(jnp.float32)
        noise = noise_ref[b].astype(jnp.float32)
        sa = sa_ref[b]                                  # sqrt_alphas_cumprod[t_b]
        s1ma = s1ma_ref[b]                              # sqrt_one_minus_alphas_cumprod[t_b]

        # q_sample: x_t = sqrt(ac_t) * x0 + sqrt(1 - ac_t) * noise   (VPU, f32)
        x_noisy = sa * x0 + s1ma * noise

        # denoise_fn(cat([condition, x_noisy], dim=1), t):
        # one fused 1x1 conv  W (C,2C) @ [cond; x_noisy] (2C,HW)  + per-channel time bias.
        xcat = jnp.concatenate([cond, x_noisy], axis=0).astype(jnp.bfloat16)   # (2C, HW)
        pred = (jnp.dot(w, xcat, preferred_element_type=jnp.float32)
                + bias_ref[b])                          # (C, HW) f32, bias (C,1) bcast over lanes

        err = noise - pred                              # f32
        sq = err * err
        sq_acc = sq if sq_acc is None else sq_acc + sq  # (C, HW) vector accumulator (VPU)

    # single cross-lane/cross-sublane reduction + one (1,1) store
    loss_ref[...] = jnp.zeros_like(loss_ref) + jnp.sum(sq_acc)


def gaussian_diffusion_loss(x_start, condition, noise, sqrt_ac_t, sqrt_1mac_t,
                            conv_w, bias):
    """Returns the MSE training loss of GaussianDiffusion.forward."""
    B, C, H, W = x_start.shape
    HW = H * W

    # bf16 inputs halve HBM traffic; all compute stays f32 inside the kernel.
    x0f = x_start.reshape(B, C, HW).astype(jnp.bfloat16)
    condf = condition.reshape(B, C, HW).astype(jnp.bfloat16)
    noisef = noise.reshape(B, C, HW).astype(jnp.bfloat16)
    w_bf = conv_w.astype(jnp.bfloat16)                  # (C, 2C) fused conv weight

    # TODO(synk): at realistic diffusion shapes (C>=64, HW>=4096) tile HW/batch with a
    # 'parallel' grid axis and per-block partial losses (v7x: 2 TCs, 64 MiB VMEM);
    # at these toy shapes a single fused step is strictly fastest.
    loss_sum = pl.pallas_call(
        diffusion_loss_kernel,
        out_shape=jax.ShapeDtypeStruct((1, 1), jnp.float32),
        grid_spec=pltpu.PrefetchScalarGridSpec(
            num_scalar_prefetch=0,
            grid=(1,),
            in_specs=[
                pl.BlockSpec(memory_space=pltpu.MemorySpace.SMEM),   # sqrt_ac_t      (B,)
                pl.BlockSpec(memory_space=pltpu.MemorySpace.SMEM),   # sqrt_1mac_t    (B,)
                pl.BlockSpec((B, C, HW), lambda i: (0, 0, 0)),       # x_start        bf16
                pl.BlockSpec((B, C, HW), lambda i: (0, 0, 0)),       # condition      bf16
                pl.BlockSpec((B, C, HW), lambda i: (0, 0, 0)),       # noise          bf16
                pl.BlockSpec((C, 2 * C), lambda i: (0, 0)),          # fused conv weight
                pl.BlockSpec((B, C, 1), lambda i: (0, 0, 0)),        # time bias      f32
            ],
            out_specs=pl.BlockSpec((1, 1), lambda i: (0, 0)),
        ),
        compiler_params=pltpu.CompilerParams(
            dimension_semantics=("arbitrary",)),
    )(sqrt_ac_t, sqrt_1mac_t, x0f, condf, noisef, w_bf, bias)

    # nn.MSELoss(reduction='mean'): divide the accumulated squared error.
    return loss_sum[0, 0] / (B * C * H * W)


# ---------------- schedule / glue (plain JAX, matches the PyTorch buffers) ---

def linear_beta_schedule(timesteps, beta_start=1e-4, beta_end=0.02):
    return jnp.linspace(beta_start, beta_end, timesteps, dtype=jnp.float32)


def sinusoidal_embedding(t, dim):
    half = dim // 2
    freqs = jnp.exp(-math.log(10000.0) * jnp.arange(half, dtype=jnp.float32) / half)
    args = t.astype(jnp.float32)[:, None] * freqs[None, :]
    return jnp.concatenate([jnp.sin(args), jnp.cos(args)], axis=-1)   # (B, dim)


if __name__ == "__main__":
    B, C, H, W = 2, 4, 16, 16
    HW = H * W
    TIMESTEPS = 1000
    TEMB_DIM = 32

    key = jax.random.PRNGKey(0)
    k1, k2, k3, k4, k5, k6 = jax.random.split(key, 6)

    # inputs of GaussianDiffusion.forward(x_start, condition)
    x_start = jax.random.normal(k1, (B, C, H, W), jnp.float32)
    condition = jax.random.normal(k2, (B, C, H, W), jnp.float32)
    # t = randint(0, timesteps, (B,)); noise = randn_like(x_start)
    # TODO(synk): PyTorch draws t/noise from torch's RNG inside forward;
    # here they are drawn host-side with JAX PRNG (semantics preserved).
    t = jax.random.randint(k3, (B,), 0, TIMESTEPS)
    noise = jax.random.normal(k4, (B, C, H, W), jnp.float32)

    # registered buffers
    betas = linear_beta_schedule(TIMESTEPS)
    alphas = 1.0 - betas
    alphas_cumprod = jnp.cumprod(alphas)
    sqrt_alphas_cumprod = jnp.sqrt(alphas_cumprod)
    sqrt_one_minus_alphas_cumprod = jnp.sqrt(1.0 - alphas_cumprod)

    # extract(a, t, x.shape) -> per-batch scalar
    sqrt_ac_t = sqrt_alphas_cumprod[t]                 # (B,)
    sqrt_1mac_t = sqrt_one_minus_alphas_cumprod[t]     # (B,)

    # deterministic synthetic denoise_fn parameters (single fused 1x1 conv 2C -> C)
    conv_w = 0.1 * jax.random.normal(k5, (C, 2 * C), jnp.float32)
    temb_w = 0.1 * jax.random.normal(k6, (TEMB_DIM, C), jnp.float32)

    # time embedding -> per-channel bias (parameter glue, kept in plain JAX)
    temb = sinusoidal_embedding(t, TEMB_DIM)           # (B, TEMB_DIM)
    bias = (temb @ temb_w)[:, :, None]                 # (B, C, 1) f32

    loss = gaussian_diffusion_loss(x_start, condition, noise,
                                   sqrt_ac_t, sqrt_1mac_t, conv_w, bias)
    loss = jax.block_until_ready(loss)

    # pure-JAX reference of the same forward pass (same bf16 rounding points).
    x0r = x_start.reshape(B, C, HW).astype(jnp.bfloat16).astype(jnp.float32)
    condr = condition.reshape(B, C, HW).astype(jnp.bfloat16).astype(jnp.float32)
    noiser = noise.reshape(B, C, HW).astype(jnp.bfloat16).astype(jnp.float32)
    x_noisy_ref = sqrt_ac_t[:, None, None] * x0r + sqrt_1mac_t[:, None, None] * noiser
    xcat_ref = jnp.concatenate([condr, x_noisy_ref], axis=1).astype(jnp.bfloat16)
    pred_ref = jnp.einsum('ok,bks->bos', conv_w.astype(jnp.bfloat16), xcat_ref,
                          preferred_element_type=jnp.float32) + bias
    loss_ref = jnp.mean((noiser - pred_ref) ** 2)
    assert jnp.allclose(loss, loss_ref, rtol=1e-4, atol=1e-6), (loss, loss_ref)

    print("KERNEL_OK")
</pallas_src>

<mosaic_0001>
module attributes {stable_mosaic.version = 11 : i64} {
  func.func @diffusion_loss_kernel(%arg0: i32, %arg1: memref<2xf32, #tpu.memory_space<smem>>, %arg2: memref<2xf32, #tpu.memory_space<smem>>, %arg3: memref<2x4x256xbf16, #tpu.memory_space<vmem>>, %arg4: memref<2x4x256xbf16, #tpu.memory_space<vmem>>, %arg5: memref<2x4x256xbf16, #tpu.memory_space<vmem>>, %arg6: memref<4x8xbf16, #tpu.memory_space<vmem>>, %arg7: memref<2x4x1xf32, #tpu.memory_space<vmem>>, %arg8: memref<1x1xf32, #tpu.memory_space<vmem>>) attributes {dimension_semantics = [#tpu.dimension_semantics<arbitrary>], iteration_bounds = array<i64: 1>, scalar_prefetch = 0 : i64, scratch_operands = 0 : i64, tpu.core_type = #tpu.core_type<tc>, window_params = [{transform_indices = @transform_0, window_bounds = array<i64: 2>}, {transform_indices = @transform_1, window_bounds = array<i64: 2>}, {pipeline_mode = #tpu.pipeline_mode<synchronous>, transform_indices = @transform_2, window_bounds = array<i64: 2, 4, 256>}, {pipeline_mode = #tpu.pipeline_mode<synchronous>, transform_indices = @transform_3, window_bounds = array<i64: 2, 4, 256>}, {pipeline_mode = #tpu.pipeline_mode<synchronous>, transform_indices = @transform_4, window_bounds = array<i64: 2, 4, 256>}, {pipeline_mode = #tpu.pipeline_mode<synchronous>, transform_indices = @transform_5, window_bounds = array<i64: 4, 8>}, {pipeline_mode = #tpu.pipeline_mode<synchronous>, transform_indices = @transform_6, window_bounds = array<i64: 2, 4, 1>}, {pipeline_mode = #tpu.pipeline_mode<synchronous>, transform_indices = @transform_7, window_bounds = array<i64: 1, 1>}]} {
    %c0 = arith.constant 0 : index
    %c0_0 = arith.constant 0 : index
    %0 = vector.load %arg6[%c0, %c0_0] : memref<4x8xbf16, #tpu.memory_space<vmem>>, vector<4x8xbf16>
    %c0_1 = arith.constant 0 : index
    %c0_2 = arith.constant 0 : index
    %c0_3 = arith.constant 0 : index
    %1 = vector.load %arg3[%c0_1, %c0_2, %c0_3] : memref<2x4x256xbf16, #tpu.memory_space<vmem>>, vector<1x4x256xbf16>
    %2 = vector.shape_cast %1 : vector<1x4x256xbf16> to vector<4x256xbf16>
    %3 = arith.extf %2 : vector<4x256xbf16> to vector<4x256xf32>
    %c0_4 = arith.constant 0 : index
    %c0_5 = arith.constant 0 : index
    %c0_6 = arith.constant 0 : index
    %4 = vector.load %arg4[%c0_4, %c0_5, %c0_6] : memref<2x4x256xbf16, #tpu.memory_space<vmem>>, vector<1x4x256xbf16>
    %5 = vector.shape_cast %4 : vector<1x4x256xbf16> to vector<4x256xbf16>
    %6 = arith.extf %5 : vector<4x256xbf16> to vector<4x256xf32>
    %c0_7 = arith.constant 0 : index
    %c0_8 = arith.constant 0 : index
    %c0_9 = arith.constant 0 : index
    %7 = vector.load %arg5[%c0_7, %c0_8, %c0_9] : memref<2x4x256xbf16, #tpu.memory_space<vmem>>, vector<1x4x256xbf16>
    %8 = vector.shape_cast %7 : vector<1x4x256xbf16> to vector<4x256xbf16>
    %9 = arith.extf %8 : vector<4x256xbf16> to vector<4x256xf32>
    %c0_10 = arith.constant 0 : index
    %10 = memref.load %arg1[%c0_10] : memref<2xf32, #tpu.memory_space<smem>>
    %c0_11 = arith.constant 0 : index
    %11 = memref.load %arg2[%c0_11] : memref<2xf32, #tpu.memory_space<smem>>
    %12 = vector.broadcast %10 : f32 to vector<4x256xf32>
    %13 = arith.mulf %12, %3 : vector<4x256xf32>
    %14 = vector.broadcast %11 : f32 to vector<4x256xf32>
    %15 = arith.mulf %14, %9 : vector<4x256xf32>
    %16 = arith.addf %13, %15 : vector<4x256xf32>
    %17 = tpu.concatenate %6, %16 in 0 : vector<4x256xf32>, vector<4x256xf32> -> vector<8x256xf32>
    %18 = arith.truncf %17 : vector<8x256xf32> to vector<8x256xbf16>
    %cst = arith.constant dense<0.000000e+00> : vector<4x256xf32>
    %19 = tpu.matmul %0, %18, %cst {dimension_numbers = #tpu.dot_dimension_numbers<[1], [0], [0], [1], [0, 0, 1, 1], [], []>} : vector<4x8xbf16>, vector<8x256xbf16>, vector<4x256xf32> -> vector<4x256xf32>
    %c0_12 = arith.constant 0 : index
    %c0_13 = arith.constant 0 : index
    %c0_14 = arith.constant 0 : index
    %20 = vector.load %arg7[%c0_12, %c0_13, %c0_14] : memref<2x4x1xf32, #tpu.memory_space<vmem>>, vector<1x4x1xf32>
    %21 = vector.shape_cast %20 : vector<1x4x1xf32> to vector<4x1xf32>
    %22 = vector.broadcast %21 : vector<4x1xf32> to vector<4x256xf32>
    %23 = arith.addf %19, %22 : vector<4x256xf32>
    %24 = arith.subf %9, %23 : vector<4x256xf32>
    %25 = arith.mulf %24, %24 : vector<4x256xf32>
    %c1 = arith.constant 1 : index
    %c0_15 = arith.constant 0 : index
    %c0_16 = arith.constant 0 : index
    %26 = vector.load %arg3[%c1, %c0_15, %c0_16] : memref<2x4x256xbf16, #tpu.memory_space<vmem>>, vector<1x4x256xbf16>
    %27 = vector.shape_cast %26 : vector<1x4x256xbf16> to vector<4x256xbf16>
    %28 = arith.extf %27 : vector<4x256xbf16> to vector<4x256xf32>
    %c1_17 = arith.constant 1 : index
    %c0_18 = arith.constant 0 : index
    %c0_19 = arith.constant 0 : index
    %29 = vector.load %arg4[%c1_17, %c0_18, %c0_19] : memref<2x4x256xbf16, #tpu.memory_space<vmem>>, vector<1x4x256xbf16>
    %30 = vector.shape_cast %29 : vector<1x4x256xbf16> to vector<4x256xbf16>
    %31 = arith.extf %30 : vector<4x256xbf16> to vector<4x256xf32>
    %c1_20 = arith.constant 1 : index
    %c0_21 = arith.constant 0 : index
    %c0_22 = arith.constant 0 : index
    %32 = vector.load %arg5[%c1_20, %c0_21, %c0_22] : memref<2x4x256xbf16, #tpu.memory_space<vmem>>, vector<1x4x256xbf16>
    %33 = vector.shape_cast %32 : vector<1x4x256xbf16> to vector<4x256xbf16>
    %34 = arith.extf %33 : vector<4x256xbf16> to vector<4x256xf32>
    %c1_23 = arith.constant 1 : index
    %35 = memref.load %arg1[%c1_23] : memref<2xf32, #tpu.memory_space<smem>>
    %c1_24 = arith.constant 1 : index
    %36 = memref.load %arg2[%c1_24] : memref<2xf32, #tpu.memory_space<smem>>
    %37 = vector.broadcast %35 : f32 to vector<4x256xf32>
    %38 = arith.mulf %37, %28 : vector<4x256xf32>
    %39 = vector.broadcast %36 : f32 to vector<4x256xf32>
    %40 = arith.mulf %39, %34 : vector<4x256xf32>
    %41 = arith.addf %38, %40 : vector<4x256xf32>
    %42 = tpu.concatenate %31, %41 in 0 : vector<4x256xf32>, vector<4x256xf32> -> vector<8x256xf32>
    %43 = arith.truncf %42 : vector<8x256xf32> to vector<8x256xbf16>
    %cst_25 = arith.constant dense<0.000000e+00> : vector<4x256xf32>
    %44 = tpu.matmul %0, %43, %cst_25 {dimension_numbers = #tpu.dot_dimension_numbers<[1], [0], [0], [1], [0, 0, 1, 1], [], []>} : vector<4x8xbf16>, vector<8x256xbf16>, vector<4x256xf32> -> vector<4x256xf32>
    %c1_26 = arith.constant 1 : index
    %c0_27 = arith.constant 0 : index
    %c0_28 = arith.constant 0 : index
    %45 = vector.load %arg7[%c1_26, %c0_27, %c0_28] : memref<2x4x1xf32, #tpu.memory_space<vmem>>, vector<1x4x1xf32>
    %46 = vector.shape_cast %45 : vector<1x4x1xf32> to vector<4x1xf32>
    %47 = vector.broadcast %46 : vector<4x1xf32> to vector<4x256xf32>
    %48 = arith.addf %44, %47 : vector<4x256xf32>
    %49 = arith.subf %34, %48 : vector<4x256xf32>
    %50 = arith.mulf %49, %49 : vector<4x256xf32>
    %51 = arith.addf %25, %50 : vector<4x256xf32>
    %cst_29 = arith.constant 0.000000e+00 : f32
    %52 = vector.broadcast %cst_29 : f32 to vector<1x1xf32>
    %53 = vector.shape_cast %51 : vector<4x256xf32> to vector<1x4x256xf32>
    %cst_30 = arith.constant dense<0.000000e+00> : vector<1xf32>
    %54 = vector.multi_reduction <add>, %53, %cst_30 [1, 2] : vector<1x4x256xf32> to vector<1xf32>
    %55 = vector.shape_cast %54 : vector<1xf32> to vector<1x1x1xf32>
    %56 = vector.extract %55[0, 0, 0] : f32 from vector<1x1x1xf32>
    %57 = vector.broadcast %56 : f32 to vector<1x1xf32>
    %58 = arith.addf %52, %57 : vector<1x1xf32>
    %c0_31 = arith.constant 0 : index
    %c0_32 = arith.constant 0 : index
    %59 = vector.load %arg8[%c0_31, %c0_32] : memref<1x1xf32, #tpu.memory_space<vmem>>, vector<1x1xf32>
    tpu.vector_store %arg8[%c0_31, %c0_32], %58 {strides = array<i32>} : memref<1x1xf32, #tpu.memory_space<vmem>>, vector<1x1xf32>,
    return
  }
  func.func @transform_0(%arg0: i32) -> i32 {
    %c0_i32 = arith.constant 0 : i32
    %c0_i32_0 = arith.constant 0 : i32
    return %c0_i32 : i32
  }
  func.func @transform_1(%arg0: i32) -> i32 {
    %c0_i32 = arith.constant 0 : i32
    %c0_i32_0 = arith.constant 0 : i32
    return %c0_i32 : i32
  }
  func.func @transform_2(%arg0: i32) -> (i32, i32, i32) {
    %c0_i32 = arith.constant 0 : i32
    %c0_i32_0 = arith.constant 0 : i32
    %c0_i32_1 = arith.constant 0 : i32
    %c0_i32_2 = arith.constant 0 : i32
    return %c0_i32, %c0_i32_0, %c0_i32_1 : i32, i32, i32
  }
  func.func @transform_3(%arg0: i32) -> (i32, i32, i32) {
    %c0_i32 = arith.constant 0 : i32
    %c0_i32_0 = arith.constant 0 : i32
    %c0_i32_1 = arith.constant 0 : i32
    %c0_i32_2 = arith.constant 0 : i32
    return %c0_i32, %c0_i32_0, %c0_i32_1 : i32, i32, i32
  }
  func.func @transform_4(%arg0: i32) -> (i32, i32, i32) {
    %c0_i32 = arith.constant 0 : i32
    %c0_i32_0 = arith.constant 0 : i32
    %c0_i32_1 = arith.constant 0 : i32
    %c0_i32_2 = arith.constant 0 : i32
    return %c0_i32, %c0_i32_0, %c0_i32_1 : i32, i32, i32
  }
  func.func @transform_5(%arg0: i32) -> (i32, i32) {
    %c0_i32 = arith.constant 0 : i32
    %c0_i32_0 = arith.constant 0 : i32
    %c0_i32_1 = arith.constant 0 : i32
    return %c0_i32, %c0_i32_0 : i32, i32
  }
  func.func @transform_6(%arg0: i32) -> (i32, i32, i32) {
    %c0_i32 = arith.constant 0 : i32
    %c0_i32_0 = arith.constant 0 : i32
    %c0_i32_1 = arith.constant 0 : i32
    %c0_i32_2 = arith.constant 0 : i32
    return %c0_i32, %c0_i32_0, %c0_i32_1 : i32, i32, i32
  }
  func.func @transform_7(%arg0: i32) -> (i32, i32) {
    %c0_i32 = arith.constant 0 : i32
    %c0_i32_0 = arith.constant 0 : i32
    %c0_i32_1 = arith.constant 0 : i32
    return %c0_i32, %c0_i32_0 : i32, i32
  }
}

</mosaic_0001>

<llo_original>
// kernel: tpu_custom_call.1
$region0: #{tpu_custom_call.1}
  #allocation0 [shape = 'u32[]', space=smem, size = 0x4, offset = 0x4, fixed_abs, tag = 'smem constant byte address 0x4 - core index']
  #allocation1 [shape = 'u32[72,128]{1,0:T(1,128)}', space=vmem, size = 0x9000, scoped, tag = 'internal scratch']
  %s0 = inlined_call_operand.vmem [shape: f32[2], index: 0, kind: input, shape index: {}]
  %s1 = inlined_call_operand.hbm [shape: f32[2], index: 1, kind: input, shape index: {}]
  %s2 = inlined_call_operand.vmem [shape: bf16[2,4,256], index: 2, kind: input, shape index: {}]
  %s3 = inlined_call_operand.hbm [shape: bf16[2,4,256], index: 3, kind: input, shape index: {}]
  %s4 = inlined_call_operand.hbm [shape: bf16[2,4,256], index: 4, kind: input, shape index: {}]
  %s5 = inlined_call_operand.vmem [shape: bf16[4,8], index: 5, kind: input, shape index: {}]
  %s6 = inlined_call_operand.vmem [shape: f32[2,4,1], index: 6, kind: input, shape index: {}]
  %s7 = inlined_call_operand.hbm [shape: f32[1,1], index: 7, kind: output, shape index: {}]
  %s8 = sld [smem:[#allocation0]]
  $region54: #{tpu_custom_call.1} parent=0
    _
  %s10 = ssub.s32 1, %s8
  %s11 = scalar_select 0, %s10, %s8
  $region1: #{tpu_custom_call.1} parent=0
    #allocation2 [shape = 'u8[512]{0}', space=smem, size = 0x200, scoped, tag = 'input window, operand 0, single buffered']
    #allocation3 [shape = 's32[1]{0}', space=sflag, size = 0x4, scoped, tag = 'scoped memory for tpu_custom_call.1']
    #allocation4 [shape = 's32[1]{0}', space=sflag, size = 0x4, scoped, tag = 'scoped memory for tpu_custom_call.1']
    #allocation5 [shape = 's32[1]{0}', space=sflag, size = 0x4, scoped, tag = 'scoped memory for tpu_custom_call.1']
    #allocation6 [shape = 's32[1]{0}', space=sflag, size = 0x4, scoped, tag = 'scoped memory for tpu_custom_call.1']
    #allocation7 [shape = 'u8[512]{0}', space=smem, size = 0x200, scoped, tag = 'input window, operand 1, single buffered']
    #allocation8 [shape = 'u8[4096]{0}', space=vmem, size = 0x1000, scoped, tag = 'input window, operand 3, single buffered']
    #allocation9 [shape = 'u8[4096]{0}', space=vmem, size = 0x1000, scoped, tag = 'input window, operand 4, single buffered']
    #allocation10 [shape = 's32[1]{0}', space=sflag, size = 0x4, scoped, tag = 'scoped memory for tpu_custom_call.1']
    #allocation11 [shape = 'u8[512]{0}', space=vmem, size = 0x400, scoped, tag = 'output window, operand 0, single buffered']
    %12 = vsyncpa [#allocation6], 0
    %13 = vsyncpa [#allocation5], 0
    %14 = vsyncpa [#allocation3], 0
    %15 = vsyncpa [#allocation10], 0
    %16 = vsyncpa [#allocation4], 0
    // Predicated region
    $region2: #{tpu_custom_call.1} parent=1 // pred_check
      _
    $region3: #{tpu_custom_call.1} parent=1 // pred_check_branch
      %18 = sbr.rel (0) target = $region5
    $region4: #{tpu_custom_call.1} parent=1 // pred_region
      %20 = vsyncadd [#allocation6], 0
      %s22 = sshll.u32 %s0, 4
      %s23 = int_to_ptr.vmem [resolvable:$true] %s22
      %25 = dma.vmem_to_smem %s23, 16, [#allocation2], [#allocation6]
    $region5: #{tpu_custom_call.1} parent=1 // pred_fallthru
      _
    // Predicated region
    $region6: #{tpu_custom_call.1} parent=1 // pred_check
      _
    $region7: #{tpu_custom_call.1} parent=1 // pred_check_branch
      %27 = sbr.rel (0) target = $region9
    $region8: #{tpu_custom_call.1} parent=1 // pred_region
      %29 = vsyncadd [#allocation5], 0
      %s31 = sshll.u32 %s1, 4
      %s32 = int_to_ptr.hbm [resolvable:$true] %s31
      %34 = dma.hbm_to_smem %s32, 16, [#allocation7], [#allocation5]
    $region9: #{tpu_custom_call.1} parent=1 // pred_fallthru
      _
    // Predicated region
    $region10: #{tpu_custom_call.1} parent=1 // pred_check
      _
    $region11: #{tpu_custom_call.1} parent=1 // pred_check_branch
      %36 = sbr.rel (0) target = $region13
    $region12: #{tpu_custom_call.1} parent=1 // pred_region
      _
    $region13: #{tpu_custom_call.1} parent=1 // pred_fallthru
      _
    // Predicated region
    $region14: #{tpu_custom_call.1} parent=1 // pred_check
      _
    $region15: #{tpu_custom_call.1} parent=1 // pred_check_branch
      %38 = sbr.rel (0) target = $region17
    $region16: #{tpu_custom_call.1} parent=1 // pred_region
      %40 = vsyncadd [#allocation3], 0
      %s41 = sshll.u32 %s3, 4
      %s42 = int_to_ptr.hbm [resolvable:$true] %s41
      %s43 = sshll.u32 [#allocation8], 4
      %s44 = int_to_ptr.vmem [resolvable:$true] %s43
      %49 = dma.hbm_to_vmem [thread:$0]  %s42, 128, %s44, [#allocation3], 64, 64, 4
    $region17: #{tpu_custom_call.1} parent=1 // pred_fallthru
      _
    // Predicated region
    $region18: #{tpu_custom_call.1} parent=1 // pred_check
      _
    $region19: #{tpu_custom_call.1} parent=1 // pred_check_branch
      %51 = sbr.rel (0) target = $region21
    $region20: #{tpu_custom_call.1} parent=1 // pred_region
      %53 = vsyncadd [#allocation10], 0
      %s54 = sshll.u32 %s4, 4
      %s55 = int_to_ptr.hbm [resolvable:$true] %s54
      %s56 = sshll.u32 [#allocation9], 4
      %s57 = int_to_ptr.vmem [resolvable:$true] %s56
      %62 = dma.hbm_to_vmem [thread:$0]  %s55, 128, %s57, [#allocation10], 64, 64, 4
    $region21: #{tpu_custom_call.1} parent=1 // pred_fallthru
      _
    // Predicated region
    $region22: #{tpu_custom_call.1} parent=1 // pred_check
      _
    $region23: #{tpu_custom_call.1} parent=1 // pred_check_branch
      %64 = sbr.rel (0) target = $region25
    $region24: #{tpu_custom_call.1} parent=1 // pred_region
      _
    $region25: #{tpu_custom_call.1} parent=1 // pred_fallthru
      _
    // Predicated region
    $region26: #{tpu_custom_call.1} parent=1 // pred_check
      _
    $region27: #{tpu_custom_call.1} parent=1 // pred_check_branch
      %66 = sbr.rel (0) target = $region29
    $region28: #{tpu_custom_call.1} parent=1 // pred_region
      _
    $region29: #{tpu_custom_call.1} parent=1 // pred_fallthru
      _
    // Predicated region
    $region30: #{tpu_custom_call.1} parent=1 // pred_check
      _
    $region31: #{tpu_custom_call.1} parent=1 // pred_check_branch
      %68 = sbr.rel (0) target = $region33
    $region32: #{tpu_custom_call.1} parent=1 // pred_region
      %70 = dma.done [#allocation6], 16
    $region33: #{tpu_custom_call.1} parent=1 // pred_fallthru
      _
    // Predicated region
    $region34: #{tpu_custom_call.1} parent=1 // pred_check
      _
    $region35: #{tpu_custom_call.1} parent=1 // pred_check_branch
      %72 = sbr.rel (0) target = $region37
    $region36: #{tpu_custom_call.1} parent=1 // pred_region
      %74 = dma.done [#allocation5], 16
    $region37: #{tpu_custom_call.1} parent=1 // pred_fallthru
      _
    // Predicated region
    $region38: #{tpu_custom_call.1} parent=1 // pred_check
      _
    $region39: #{tpu_custom_call.1} parent=1 // pred_check_branch
      %76 = sbr.rel (0) target = $region41
    $region40: #{tpu_custom_call.1} parent=1 // pred_region
      %78 = dma.done [#allocation3], 128
    $region41: #{tpu_custom_call.1} parent=1 // pred_fallthru
      _
    // Predicated region
    $region42: #{tpu_custom_call.1} parent=1 // pred_check
      _
    $region43: #{tpu_custom_call.1} parent=1 // pred_check_branch
      %80 = sbr.rel (0) target = $region45
    $region44: #{tpu_custom_call.1} parent=1 // pred_region
      %82 = dma.done [#allocation10], 128
    $region45: #{tpu_custom_call.1} parent=1 // pred_fallthru
      _
    %83 = sfence
    %v85 = vld [vmem:[%s5] sm:$0x3]
    %v86 = vld [vmem:[%s2] sm:$0xf]
    %v87 = vunpack.c.l.bf16 %v86
    %v88 = vld [vmem:[#allocation8] sm:$0xf]
    %v89 = vunpack.c.l.bf16 %v88
    %v90 = vld [vmem:[#allocation9] sm:$0xf]
    %v91 = vunpack.c.l.bf16 %v90
    %s92 = sld [smem:[#allocation2]]
    %s93 = sld [smem:[#allocation7]]
    %v94 = vstv %s92
    %v95 = vmul.f32 %v94, %v87
    %v96 = vstv %s93
    %v97 = vmul.f32 %v96, %v91
    %v98 = vadd.f32 %v95, %v97
    %100 = vst [vmem:[#allocation1] ss:$2 sm:$0xff] %v89
    %v101 = vld.sshfl [vmem:[#allocation1] sm:$0xff pattern:$0x75316420]
    %v102 = vld.sshfl [vmem:[#allocation1 + $0x8] sm:$0xff pattern:$0x75316420]
    %s106 = scalar_lea.vmem [#allocation1], 1
    %107 = vst [vmem:[%s106] ss:$2 sm:$0xff] %v98
    %v108 = vld.sshfl [vmem:[#allocation1] sm:$0xff pattern:$0x75316420]
    %v109 = vld.sshfl [vmem:[#allocation1 + $0x8] sm:$0xff pattern:$0x75316420]
    %vm112 = vcmask 1043456
    %v113 = vsel %vm112, %v101, %v108
    %v114 = vsel %vm112, %v102, %v109
    %v115 = vpack.c.bf16 %v113, %v113
    %v116 = vpack.c.bf16 %v114, %v114
    %v117 = vld [vmem:[%s6] sm:$0xf]
    %119 = vset.pattern.permute.xlu0 0
    %120 = vperm.xlu0 %119, %v117
    %v121 = vpop.permute.xlu0 %120
    %vm123 = vcmask 64512
    %v125 = vsel %vm123, %v85, 0
    %v128 = vsel %vm112, %v115, 0
    %v131 = vsel %vm112, %v116, 0
    %133 = vmatpush.bf16.msra.mxu0 0
    %134 = vmatpush.bf16.msra.mxu0 0
    %135 = vmatpush.bf16.msra.mxu0 0
    %136 = vmatpush.bf16.msra.mxu0 0
    %137 = vmatpush.bf16.msra.mxu0 0
    %138 = vmatpush.bf16.msra.mxu0 0
    %139 = vmatpush.bf16.msra.mxu0 0
    %140 = vmatpush.bf16.msra.mxu0 %v128
    %141 = vmatmul.bf16.gmra.mxu0 %v125
    %v142 = vpop.f32.mrf.mxu0
    %v143 = vadd.f32 %v121, %v142
    %v144 = vpop.f32.mrf.mxu0
    %145 = vdwg.mxu0
    %146 = vmatpush.bf16.msra.mxu0 0
    %147 = vmatpush.bf16.msra.mxu0 0
    %148 = vmatpush.bf16.msra.mxu0 0
    %149 = vmatpush.bf16.msra.mxu0 0
    %150 = vmatpush.bf16.msra.mxu0 0
    %151 = vmatpush.bf16.msra.mxu0 0
    %152 = vmatpush.bf16.msra.mxu0 0
    %153 = vmatpush.bf16.msra.mxu0 %v131
    %154 = vmatmul.bf16.gmra.mxu0 %v125
    %v155 = vpop.f32.mrf.mxu0
    %v156 = vadd.f32 %v121, %v155
    %v157 = vpop.f32.mrf.mxu0
    %158 = vdwg.mxu0
    %v161 = vrot.slane %v156, 4
    %v162 = vsel %vm112, %v143, %v161
    %v164 = vsub.f32 %v91, %v162
    %v165 = vmul.f32 %v164, %v164
    %s166 = scalar_lea.vmem %s2, 4
    %v167 = vld [vmem:[%s166] sm:$0xf]
    %v168 = vunpack.c.l.bf16 %v167
    %s169 = scalar_lea.vmem [#allocation8], 4
    %v170 = vld [vmem:[%s169] sm:$0xf]
    %v171 = vunpack.c.l.bf16 %v170
    %s172 = scalar_lea.vmem [#allocation9], 4
    %v173 = vld [vmem:[%s172] sm:$0xf]
    %v174 = vunpack.c.l.bf16 %v173
    %s175 = sld [smem:[#allocation2 + $0x1]]
    %s176 = sld [smem:[#allocation7 + $0x1]]
    %v177 = vstv %s175
    %v178 = vmul.f32 %v177, %v168
    %v179 = vstv %s176
    %v180 = vmul.f32 %v179, %v174
    %v181 = vadd.f32 %v178, %v180
    %183 = vst [vmem:[#allocation1] ss:$2 sm:$0xff] %v171
    %v184 = vld.sshfl [vmem:[#allocation1] sm:$0xff pattern:$0x75316420]
    %v185 = vld.sshfl [vmem:[#allocation1 + $0x8] sm:$0xff pattern:$0x75316420]
    %s189 = scalar_lea.vmem [#allocation1], 1
    %190 = vst [vmem:[%s189] ss:$2 sm:$0xff] %v181
    %v191 = vld.sshfl [vmem:[#allocation1] sm:$0xff pattern:$0x75316420]
    %v192 = vld.sshfl [vmem:[#allocation1 + $0x8] sm:$0xff pattern:$0x75316420]
    %v195 = vsel %vm112, %v184, %v191
    %v196 = vsel %vm112, %v185, %v192
    %v197 = vpack.c.bf16 %v195, %v195
    %v198 = vpack.c.bf16 %v196, %v196
    %s199 = scalar_lea.vmem %s6, 4
    %v200 = vld [vmem:[%s199] sm:$0xf]
    %202 = vset.pattern.permute.xlu0 0
    %203 = vperm.xlu0 %202, %v200
    %v204 = vpop.permute.xlu0 %203
    %v207 = vsel %vm112, %v197, 0
    %v210 = vsel %vm112, %v198, 0
    %212 = vmatpush.bf16.msra.mxu0 0
    %213 = vmatpush.bf16.msra.mxu0 0
    %214 = vmatpush.bf16.msra.mxu0 0
    %215 = vmatpush.bf16.msra.mxu0 0
    %216 = vmatpush.bf16.msra.mxu0 0
    %217 = vmatpush.bf16.msra.mxu0 0
    %218 = vmatpush.bf16.msra.mxu0 0
    %219 = vmatpush.bf16.msra.mxu0 %v207
    %220 = vmatmul.bf16.gmra.mxu0 %v125
    %v221 = vpop.f32.mrf.mxu0
    %v222 = vadd.f32 %v204, %v221
    %v223 = vpop.f32.mrf.mxu0
    %224 = vdwg.mxu0
    %225 = vmatpush.bf16.msra.mxu0 0
    %226 = vmatpush.bf16.msra.mxu0 0
    %227 = vmatpush.bf16.msra.mxu0 0
    %228 = vmatpush.bf16.msra.mxu0 0
    %229 = vmatpush.bf16.msra.mxu0 0
    %230 = vmatpush.bf16.msra.mxu0 0
    %231 = vmatpush.bf16.msra.mxu0 0
    %232 = vmatpush.bf16.msra.mxu0 %v210
    %233 = vmatmul.bf16.gmra.mxu0 %v125
    %v234 = vpop.f32.mrf.mxu0
    %v235 = vadd.f32 %v204, %v234
    %v236 = vpop.f32.mrf.mxu0
    %237 = vdwg.mxu0
    %v240 = vrot.slane %v235, 4
    %v241 = vsel %vm112, %v222, %v240
    %v243 = vsub.f32 %v174, %v241
    %v244 = vmul.f32 %v243, %v243
    %v245 = vadd.f32 %v165, %v244
    %247 = vst [vmem:[#allocation1] ss:$2 sm:$0xff] %v245
    %v248 = vld.sshfl [vmem:[#allocation1] sm:$0xff pattern:$0x75316420]
    %v249 = vld.sshfl [vmem:[#allocation1 + $0x8] sm:$0xff pattern:$0x75316420]
    %v252 = vsel %vm112, %v248, 0.0
    %v253 = vsel %vm112, %v249, 0.0
    %v254 = vadd.f32 %v252, %v253
    %255 = vadd.xlane.f32.xlu0 %v254
    %v256 = vpop.xlane.xlu0 %255
    %v257 = vrot.slane %v256, 4
    %v258 = vadd.f32 %v256, %v257
    %v259 = vrot.slane %v258, 2
    %v260 = vadd.f32 %v258, %v259
    %v261 = vrot.slane %v260, 1
    %v262 = vadd.f32 %v260, %v261
    %s263 = vtos %v262
    %v264 = vstv %s263
    %v265 = vadd.f32 %v264, 0.0
    %vm266 = vcmask 0
    %267 = vst.msk [vmem:[#allocation11] sm:$0x1] %vm266, %v265
    // Predicated region
    $region46: #{tpu_custom_call.1} parent=1 // pred_check
      _
    $region47: #{tpu_custom_call.1} parent=1 // pred_check_branch
      %269 = sbr.rel (0) target = $region49
    $region48: #{tpu_custom_call.1} parent=1 // pred_region
      %271 = vsyncadd [#allocation4], 0
      %s273 = sshll.u32 [#allocation11], 4
      %s274 = int_to_ptr.vmem [resolvable:$true] %s273
      %s275 = sshll.u32 %s7, 4
      %s276 = int_to_ptr.hbm [resolvable:$true] %s275
      %278 = dma.vmem_to_hbm [thread:$0]  %s274, 16, %s276, [#allocation4]
    $region49: #{tpu_custom_call.1} parent=1 // pred_fallthru
      _
    // Predicated region
    $region50: #{tpu_custom_call.1} parent=1 // pred_check
      _
    $region51: #{tpu_custom_call.1} parent=1 // pred_check_branch
      %280 = sbr.rel (0) target = $region53
    $region52: #{tpu_custom_call.1} parent=1 // pred_region
      %282 = dma.done [#allocation4], 16
    $region53: #{tpu_custom_call.1} parent=1 // pred_fallthru
      _
    %283 = vsyncpa [#allocation3], 1
    %284 = vsyncpa [#allocation10], 1
    %285 = vsyncpa [#allocation4], 1
    %286 = vsyncpa [#allocation5], 1
    %287 = vsyncpa [#allocation6], 1

</llo_original>
